<compile_context>
chip_gen: v7x
topology: tpu7x:2x2x1
jax: 0.10.0
libtpu: 0.0.40
codegen_flags: <defaults>
</compile_context>

<pallas_src>
import jax
import jax.numpy as jnp
from jax.experimental import pallas as pl
from jax.experimental.pallas import tpu as pltpu


# -----------------------------------------------------------------------------
# Primary path: aliased, zero-data-movement identity.
# -----------------------------------------------------------------------------
def _identity_alias_kernel(x_hbm_ref, o_hbm_ref):
    # o_hbm_ref *is* x_hbm_ref (input_output_aliases={0: 0}): the bytes are
    # already correct in place.  `touch` pins a fake read/write dependency so
    # the aliased output is considered produced — no DMA, no vreg traffic.
    del x_hbm_ref
    pltpu.touch(o_hbm_ref)


def _identity_alias(x: jax.Array) -> jax.Array:
    return pl.pallas_call(
        _identity_alias_kernel,
        out_shape=jax.ShapeDtypeStruct(x.shape, x.dtype),
        in_specs=[pl.BlockSpec(memory_space=pl.ANY)],
        out_specs=pl.BlockSpec(memory_space=pl.ANY),
        input_output_aliases={0: 0},
        cost_estimate=pl.CostEstimate(flops=0, transcendentals=0, bytes_accessed=0),
    )(x)


# -----------------------------------------------------------------------------
# Fallback / non-aliased path: lane-dense tiled HBM copy.
# -----------------------------------------------------------------------------
_LANE_CANDIDATES = (8192, 4096, 2048, 1024, 512, 256, 128)
_TINY_BYTES = 256 * 1024               # single-block fast path threshold
_TARGET_BLOCK_BYTES = 2 * 1024 * 1024  # ~2 MiB/block -> ~8 MiB VMEM double-buffered


def _sublane_pack(dtype) -> int:
    # Rows per packed vreg sublane group: f32 -> 8, bf16/f16 -> 16, int8/fp8 -> 32.
    return max(8, 32 // max(1, jnp.dtype(dtype).itemsize))


def _pick_2d_layout(x: jax.Array) -> tuple[int, int]:
    """Flatten to (rows, cols) with cols a large multiple of 128 when possible."""
    total = x.size
    for cols in _LANE_CANDIDATES:
        if total % cols == 0:
            return total // cols, cols
    # Fallback (total not a multiple of 128): keep the original last dim as lanes.
    if x.ndim >= 2 and total % x.shape[-1] == 0:
        return total // x.shape[-1], x.shape[-1]
    return 1, total


def _pick_tile_rows(rows: int, max_tile_rows: int, pack: int) -> int:
    target = min(max_tile_rows, rows)
    target = max(pack, (target // pack) * pack)
    target = min(target, rows)
    # Prefer a tile that divides rows exactly: no ragged tail, no masked stores.
    for t in range(target, pack - 1, -pack):
        if rows % t == 0:
            return t
    return target  # cdiv ragged grid handles the tail correctly


def _identity_copy_kernel(x_ref, o_ref):
    o_ref[...] = x_ref[...]


def identity_copy_forward(x: jax.Array) -> jax.Array:
    """Identity that materializes a fresh (non-aliased) output buffer."""
    if x.size == 0:
        return x

    orig_shape = x.shape
    dtype = x.dtype
    itemsize = jnp.dtype(dtype).itemsize
    total = x.size
    total_bytes = total * itemsize
    pack = _sublane_pack(dtype)

    rows, cols = _pick_2d_layout(x)
    x2d = x.reshape(rows, cols)

    if total_bytes <= _TINY_BYTES or rows <= pack:
        # Tiny / thin tensors: one block covering the whole array.
        tile_rows = rows
    else:
        tile_cap = max(pack, _TARGET_BLOCK_BYTES // (cols * itemsize))
        # v7x has 2 TensorCores: keep >= 2 grid steps on mid/large tensors so
        # the "parallel" axis can be sharded across both cores.
        tile_cap = min(tile_cap, max(pack, rows // 2))
        tile_rows = _pick_tile_rows(rows, tile_cap, pack)

    grid = (pl.cdiv(rows, tile_rows),)

    out2d = pl.pallas_call(
        _identity_copy_kernel,
        out_shape=jax.ShapeDtypeStruct((rows, cols), dtype),
        grid=grid,
        in_specs=[pl.BlockSpec((tile_rows, cols), lambda i: (i, 0))],
        out_specs=pl.BlockSpec((tile_rows, cols), lambda i: (i, 0)),
        compiler_params=pltpu.CompilerParams(
            dimension_semantics=("parallel",),
        ),
        cost_estimate=pl.CostEstimate(
            flops=0, transcendentals=0, bytes_accessed=2 * total_bytes
        ),
    )(x2d)

    return out2d.reshape(orig_shape)


# -----------------------------------------------------------------------------
# Public entry point: Identity.forward(x) -> x.
# -----------------------------------------------------------------------------
def identity_forward(x: jax.Array) -> jax.Array:
    if x.size == 0:
        return x
    try:
        return _identity_alias(x)
    except Exception:
        # Defensive fallback in case the touch-on-HBM aliased no-op does not
        # lower on some jaxlib build; the tiled copy is exact and known-good.
        return identity_copy_forward(x)


if __name__ == "__main__":
    key = jax.random.PRNGKey(0)
    # Small NCHW input consistent with NB201 conv ops: batch=2, channels=4, 16x16.
    x = jax.random.normal(key, (2, 4, 16, 16), dtype=jnp.float32)

    # Primary (aliased, zero-movement) path.
    y = identity_forward(x)
    y = jax.block_until_ready(y)
    assert y.shape == x.shape
    assert y.dtype == x.dtype
    assert bool(jnp.array_equal(y, x))

    # Non-aliased copy path (distinct output buffer).
    z = identity_copy_forward(x)
    z = jax.block_until_ready(z)
    assert z.shape == x.shape
    assert z.dtype == x.dtype
    assert bool(jnp.array_equal(z, x))

    print("KERNEL_OK")
</pallas_src>

<mosaic_0001>
module attributes {stable_mosaic.version = 11 : i64} {
  func.func @_identity_alias_kernel(%arg0: memref<2x4x16x16xf32, #tpu.memory_space<any>>, %arg1: memref<2x4x16x16xf32, #tpu.memory_space<any>>) attributes {dimension_semantics = [], scalar_prefetch = 0 : i64, scratch_operands = 0 : i64, tpu.core_type = #tpu.core_type<tc>} {
    return
  }
}

module attributes {stable_mosaic.version = 11 : i64} {
  func.func @_identity_copy_kernel(%arg0: i32, %arg1: memref<1x2048xf32, #tpu.memory_space<vmem>>, %arg2: memref<1x2048xf32, #tpu.memory_space<vmem>>) attributes {dimension_semantics = [#tpu.dimension_semantics<parallel>], iteration_bounds = array<i64: 1>, scalar_prefetch = 0 : i64, scratch_operands = 0 : i64, tpu.core_type = #tpu.core_type<tc>, window_params = [{transform_indices = @transform_0, window_bounds = array<i64: 1, 2048>}, {transform_indices = @transform_1, window_bounds = array<i64: 1, 2048>}]} {
    %c0 = arith.constant 0 : index
    %c0_0 = arith.constant 0 : index
    %0 = vector.load %arg1[%c0, %c0_0] : memref<1x2048xf32, #tpu.memory_space<vmem>>, vector<1x2048xf32>
    %c0_1 = arith.constant 0 : index
    %c0_2 = arith.constant 0 : index
    %1 = vector.load %arg2[%c0_1, %c0_2] : memref<1x2048xf32, #tpu.memory_space<vmem>>, vector<1x2048xf32>
    tpu.vector_store %arg2[%c0_1, %c0_2], %0 {strides = array<i32>} : memref<1x2048xf32, #tpu.memory_space<vmem>>, vector<1x2048xf32>,
    return
  }
  func.func @transform_0(%arg0: i32) -> (i32, i32) {
    %c0_i32 = arith.constant 0 : i32
    %c0_i32_0 = arith.constant 0 : i32
    return %arg0, %c0_i32 : i32, i32
  }
  func.func @transform_1(%arg0: i32) -> (i32, i32) {
    %c0_i32 = arith.constant 0 : i32
    %c0_i32_0 = arith.constant 0 : i32
    return %arg0, %c0_i32 : i32, i32
  }
}

</mosaic_0001>

<llo_original>
// kernel: tpu_custom_call.1
$region0: #{tpu_custom_call.1}
  #allocation0 [shape = 'u32[]', space=smem, size = 0x4, offset = 0x4, fixed_abs, tag = 'smem constant byte address 0x4 - core index']
  #allocation1 [shape = 'u32[144,128]{1,0:T(1,128)}', space=vmem, size = 0x12000, scoped, tag = 'internal scratch']
  %s0 = inlined_call_operand.hbm [shape: f32[2,4,16,16], index: 0, kind: input, shape index: {}, may-alias: {0,1}]
  %s1 = inlined_call_operand.hbm [shape: f32[2,4,16,16], index: 1, kind: output, shape index: {}, may-alias: {0,1}]
  %s2 = sld [smem:[#allocation0]]
  $region2: #{tpu_custom_call.1} parent=0
    _
  %s4 = ssub.s32 1, %s2
  %s5 = scalar_select 0, %s4, %s2

// kernel: tpu_custom_call.1
$region0: #{tpu_custom_call.1}
  #allocation0 [shape = 'u32[]', space=smem, size = 0x4, offset = 0x4, fixed_abs, tag = 'smem constant byte address 0x4 - core index']
  #allocation1 [shape = 'u32[144,128]{1,0:T(1,128)}', space=vmem, size = 0x12000, scoped, tag = 'internal scratch']
  %s0 = inlined_call_operand.hbm [shape: f32[1,2048], index: 0, kind: input, shape index: {}]
  %s1 = inlined_call_operand.hbm [shape: f32[1,2048], index: 1, kind: output, shape index: {}]
  %s2 = sld [smem:[#allocation0]]
  $region18: #{tpu_custom_call.1} parent=0
    _
  %s4 = ssub.s32 1, %s2
  %s5 = scalar_select 0, %s4, %s2
  $region1: #{tpu_custom_call.1} parent=0
    #allocation2 [shape = 'u8[8192]{0}', space=vmem, size = 0x2000, scoped, tag = 'input window, operand 0, single buffered']
    #allocation3 [shape = 's32[1]{0}', space=sflag, size = 0x4, scoped, tag = 'scoped memory for tpu_custom_call.1']
    #allocation4 [shape = 's32[1]{0}', space=sflag, size = 0x4, scoped, tag = 'scoped memory for tpu_custom_call.1']
    #allocation5 [shape = 'u8[8192]{0}', space=vmem, size = 0x2000, scoped, tag = 'output window, operand 0, single buffered']
    %6 = vsyncpa [#allocation3], 0
    %7 = vsyncpa [#allocation4], 0
    // Predicated region
    $region2: #{tpu_custom_call.1} parent=1 // pred_check
      _
    $region3: #{tpu_custom_call.1} parent=1 // pred_check_branch
      %9 = sbr.rel (0) target = $region5
    $region4: #{tpu_custom_call.1} parent=1 // pred_region
      %s11 = ssub.s32 256, 256
      %12 = vsyncadd [#allocation3], %s11
      %s14 = sshll.u32 [#allocation2], 4
      %s15 = int_to_ptr.vmem [resolvable:$true] %s14
      %17 = dma.hbm_to_vmem [thread:$0]  %s0, 256, %s15, [#allocation3]
    $region5: #{tpu_custom_call.1} parent=1 // pred_fallthru
      _
    // Predicated region
    $region6: #{tpu_custom_call.1} parent=1 // pred_check
      _
    $region7: #{tpu_custom_call.1} parent=1 // pred_check_branch
      %19 = sbr.rel (0) target = $region9
    $region8: #{tpu_custom_call.1} parent=1 // pred_region
      %20 = dma.done [#allocation3], 256
    $region9: #{tpu_custom_call.1} parent=1 // pred_fallthru
      _
    %v21 = vld [vmem:[#allocation2] sm:$0xff]
    %v22 = vld [vmem:[#allocation2 + $0x8] sm:$0xff]
    %23 = vst [vmem:[#allocation5] sm:$0xff] %v21
    %24 = vst [vmem:[#allocation5 + $0x8] sm:$0xff] %v22
    // Predicated region
    $region10: #{tpu_custom_call.1} parent=1 // pred_check
      _
    $region11: #{tpu_custom_call.1} parent=1 // pred_check_branch
      %26 = sbr.rel (0) target = $region13
    $region12: #{tpu_custom_call.1} parent=1 // pred_region
      %s28 = ssub.s32 256, 256
      %29 = vsyncadd [#allocation4], %s28
      %s31 = sshll.u32 [#allocation5], 4
      %s32 = int_to_ptr.vmem [resolvable:$true] %s31
      %34 = dma.vmem_to_hbm [thread:$0]  %s32, 256, %s1, [#allocation4]
    $region13: #{tpu_custom_call.1} parent=1 // pred_fallthru
      _
    // Predicated region
    $region14: #{tpu_custom_call.1} parent=1 // pred_check
      _
    $region15: #{tpu_custom_call.1} parent=1 // pred_check_branch
      %36 = sbr.rel (0) target = $region17
    $region16: #{tpu_custom_call.1} parent=1 // pred_region
      %37 = dma.done [#allocation4], 256
    $region17: #{tpu_custom_call.1} parent=1 // pred_fallthru
      _
    %38 = vsyncpa [#allocation3], 1
    %39 = vsyncpa [#allocation4], 1

</llo_original>
